<compile_context>
chip_gen: v7x
topology: tpu7x:2x2x1
jax: 0.10.0
libtpu: 0.0.40
codegen_flags: <defaults>
</compile_context>

<pallas_src>
import jax
import jax.numpy as jnp
from jax import lax
from jax.experimental import pallas as pl
from jax.experimental.pallas import tpu as pltpu


def _round_up(x, m):
    return ((x + m - 1) // m) * m


def _row_tile(rows, max_tile=512):
    rt = min(rows, max_tile)
    return rt, _round_up(rows, rt)


# ----------------------------------------------------------------------------
# Stage A: batched input projection for all timesteps (off the serial path).
#   gi = y @ Wi_packed + bi, bi = [b_ir+b_hr | b_iz+b_hz | b_in] (lane-padded).
# ----------------------------------------------------------------------------
def input_proj_kernel(y_ref, wi_ref, bi_ref, gi_ref):
    cdt = wi_ref.dtype
    gi = jnp.dot(y_ref[...].astype(cdt), wi_ref[...],
                 preferred_element_type=jnp.float32) + bi_ref[...]
    gi_ref[...] = gi


# ----------------------------------------------------------------------------
# Stage B: serial GRU recurrence, C timesteps per grid iteration, hidden state
# carried in VMEM scratch.  PyTorch GRUCell gate order is [r, z, n]:
#   r  = sigmoid(gi_r + W_hr h)               (b_ir + b_hr folded into gi_r)
#   z  = sigmoid(gi_z + W_hz h)               (b_iz + b_hz folded into gi_z)
#   n  = tanh   (gi_n + r * (W_hn h + b_hn))  (b_in folded into gi_n)
#   h' = n + z * (h - n)                      (== (1-z)*n + z*h)
# ----------------------------------------------------------------------------
def gru_recurrent_kernel(gi_ref, h0_ref, whh_ref, bhn_ref, hid_ref, h_sc):
    c = pl.program_id(0)
    C = gi_ref.shape[0]
    Hp = h0_ref.shape[1]
    cdt = whh_ref.dtype

    @pl.when(c == 0)
    def _():
        h_sc[...] = h0_ref[...]

    b_hn = bhn_ref[...]                          # hoisted once per chunk

    def step(i, h):
        gi = gi_ref[i]                           # (N, 3*Hp) f32, biases baked in
        gh = jnp.dot(h.astype(cdt), whh_ref[...],
                     preferred_element_type=jnp.float32)
        r = jax.nn.sigmoid(gi[:, 0:Hp] + gh[:, 0:Hp])
        z = jax.nn.sigmoid(gi[:, Hp:2 * Hp] + gh[:, Hp:2 * Hp])
        n = jnp.tanh(gi[:, 2 * Hp:3 * Hp] + r * (gh[:, 2 * Hp:3 * Hp] + b_hn))
        h_new = n + z * (h - n)
        hid_ref[i] = h_new                       # lane-dense (N, Hp) store
        return h_new

    h_sc[...] = lax.fori_loop(0, C, step, h_sc[...], unroll=True)


# ----------------------------------------------------------------------------
# Stage C: batched output head over all T*N rows:
#   out = ReLU(h @ W1 + b1) @ W2 + b2
# ----------------------------------------------------------------------------
def head_kernel(h_ref, w1_ref, b1_ref, w2_ref, b2_ref, out_ref):
    cdt = w1_ref.dtype
    a1 = jnp.dot(h_ref[...].astype(cdt), w1_ref[...],
                 preferred_element_type=jnp.float32) + b1_ref[...]
    a1 = jnp.maximum(a1, 0.0)
    out = jnp.dot(a1.astype(cdt), w2_ref[...],
                  preferred_element_type=jnp.float32) + b2_ref[...]
    out_ref[...] = out.astype(out_ref.dtype)


# ----------------------------------------------------------------------------
# One-time parameter packing (transposes, bias fusion, lane padding).
# ----------------------------------------------------------------------------
def pack_params(params, input_feature_len, hidden_size, output_size,
                compute_dtype=jnp.float32):
    F, H, Fout = input_feature_len, hidden_size, output_size
    Mid = params["w_out1"].shape[0]              # 50
    Fp, Hp = _round_up(F, 128), _round_up(H, 128)
    Midp, Foutp = _round_up(Mid, 128), _round_up(Fout, 128)

    w_ih, w_hh = params["w_ih"], params["w_hh"]  # (3H, F), (3H, H)
    b_ih, b_hh = params["b_ih"], params["b_hh"]  # (3H,),   (3H,)

    Wi = jnp.zeros((Fp, 3 * Hp), jnp.float32)
    Wh = jnp.zeros((Hp, 3 * Hp), jnp.float32)
    bi = jnp.zeros((1, 3 * Hp), jnp.float32)
    for g in range(3):                           # gate order: r, z, n
        Wi = Wi.at[0:F, g * Hp:g * Hp + H].set(w_ih[g * H:(g + 1) * H, :].T)
        Wh = Wh.at[0:H, g * Hp:g * Hp + H].set(w_hh[g * H:(g + 1) * H, :].T)
    bi = bi.at[0, 0:H].set(b_ih[0:H] + b_hh[0:H])                    # r
    bi = bi.at[0, Hp:Hp + H].set(b_ih[H:2 * H] + b_hh[H:2 * H])      # z
    bi = bi.at[0, 2 * Hp:2 * Hp + H].set(b_ih[2 * H:3 * H])          # b_in
    bhn = jnp.zeros((1, Hp), jnp.float32).at[0, 0:H].set(b_hh[2 * H:3 * H])

    W1p = jnp.zeros((Hp, Midp), jnp.float32).at[0:H, 0:Mid].set(params["w_out1"].T)
    b1p = jnp.zeros((1, Midp), jnp.float32).at[0, 0:Mid].set(params["b_out1"])
    W2p = jnp.zeros((Midp, Foutp), jnp.float32).at[0:Mid, 0:Fout].set(params["w_out"].T)
    b2p = jnp.zeros((1, Foutp), jnp.float32).at[0, 0:Fout].set(params["b_out"])

    return {
        "Wi": Wi.astype(compute_dtype), "bi": bi,        # biases stay f32
        "Wh": Wh.astype(compute_dtype), "bhn": bhn,
        "W1p": W1p.astype(compute_dtype), "b1p": b1p,
        "W2p": W2p.astype(compute_dtype), "b2p": b2p,
        "dims": (F, H, Mid, Fout, Fp, Hp, Midp, Foutp),
    }


# ----------------------------------------------------------------------------
# Wrappers.
# ----------------------------------------------------------------------------
def decoder_sequence_forward(y_seq, h0, packed, chunk=None):
    """Run the DecoderCell recurrently over y_seq (T, N, F).

    Returns (out_seq (T, N, Fout), hid_seq (T, N, H))."""
    F, H, Mid, Fout, Fp, Hp, Midp, Foutp = packed["dims"]
    T, N, _ = y_seq.shape
    const2 = lambda i: (0, 0)        # weights: same block every step -> VMEM-resident

    C = chunk if chunk is not None else min(T, 8)
    Tp = _round_up(T, C)
    Np = _round_up(N, 8)

    # Single pad on entry (time pad for chunking, batch pad to sublane=8, lane
    # pad to 128).  TODO(synk): in a real pipeline keep y/out/hid in this
    # padded layout end-to-end instead of padding/slicing around each call.
    y_pad = jnp.pad(y_seq.astype(jnp.float32),
                    ((0, Tp - T), (0, Np - N), (0, Fp - F)))
    h0_pad = jnp.pad(h0.astype(jnp.float32), ((0, Np - N), (0, Hp - H)))

    rows = Tp * Np
    RT, rows_p = _row_tile(rows)
    y2 = y_pad.reshape(rows, Fp)
    if rows_p != rows:
        y2 = jnp.pad(y2, ((0, rows_p - rows), (0, 0)))

    # ---- Stage A: batched input projection (T-parallel) ----------------------
    gi2 = pl.pallas_call(
        input_proj_kernel,
        out_shape=jax.ShapeDtypeStruct((rows_p, 3 * Hp), jnp.float32),
        grid_spec=pltpu.PrefetchScalarGridSpec(
            num_scalar_prefetch=0,
            grid=(rows_p // RT,),
            in_specs=[
                pl.BlockSpec((RT, Fp), lambda i: (i, 0)),
                pl.BlockSpec((Fp, 3 * Hp), const2),
                pl.BlockSpec((1, 3 * Hp), const2),
            ],
            out_specs=pl.BlockSpec((RT, 3 * Hp), lambda i: (i, 0)),
        ),
        compiler_params=pltpu.CompilerParams(
            dimension_semantics=("parallel",)),
    )(y2, packed["Wi"], packed["bi"])
    gi_all = gi2[:rows].reshape(Tp, Np, 3 * Hp)

    # ---- Stage B: serial recurrence (only h @ W_hh on the critical path) -----
    flops = int(2 * Tp * Np * Hp * 3 * Hp)
    transc = int(3 * Tp * Np * Hp)
    bytes_acc = int(gi_all.size * 4 + Tp * Np * Hp * 4 + h0_pad.size * 4
                    + packed["Wh"].size * packed["Wh"].dtype.itemsize
                    + packed["bhn"].size * 4)

    hid_pad = pl.pallas_call(
        gru_recurrent_kernel,
        out_shape=jax.ShapeDtypeStruct((Tp, Np, Hp), jnp.float32),
        grid_spec=pltpu.PrefetchScalarGridSpec(
            num_scalar_prefetch=0,
            grid=(Tp // C,),
            in_specs=[
                pl.BlockSpec((C, Np, 3 * Hp), lambda c: (c, 0, 0)),  # gi chunk
                pl.BlockSpec((Np, Hp), const2),                      # h0 (t=0)
                pl.BlockSpec((Hp, 3 * Hp), const2),                  # W_hh packed
                pl.BlockSpec((1, Hp), const2),                       # b_hn
            ],
            out_specs=pl.BlockSpec((C, Np, Hp), lambda c: (c, 0, 0)),
            scratch_shapes=[pltpu.VMEM((Np, Hp), jnp.float32)],      # recurrent h
        ),
        compiler_params=pltpu.CompilerParams(
            dimension_semantics=("arbitrary",)),
        cost_estimate=pl.CostEstimate(flops=flops, transcendentals=transc,
                                      bytes_accessed=bytes_acc),
    )(gi_all, h0_pad, packed["Wh"], packed["bhn"])

    # ---- Stage C: batched output head (T-parallel) ----------------------------
    hid2 = hid_pad.reshape(rows, Hp)
    if rows_p != rows:
        hid2 = jnp.pad(hid2, ((0, rows_p - rows), (0, 0)))
    out2 = pl.pallas_call(
        head_kernel,
        out_shape=jax.ShapeDtypeStruct((rows_p, Foutp), jnp.float32),
        grid_spec=pltpu.PrefetchScalarGridSpec(
            num_scalar_prefetch=0,
            grid=(rows_p // RT,),
            in_specs=[
                pl.BlockSpec((RT, Hp), lambda i: (i, 0)),
                pl.BlockSpec((Hp, Midp), const2),
                pl.BlockSpec((1, Midp), const2),
                pl.BlockSpec((Midp, Foutp), const2),
                pl.BlockSpec((1, Foutp), const2),
            ],
            out_specs=pl.BlockSpec((RT, Foutp), lambda i: (i, 0)),
        ),
        compiler_params=pltpu.CompilerParams(
            dimension_semantics=("parallel",)),
    )(hid2, packed["W1p"], packed["b1p"], packed["W2p"], packed["b2p"])

    out_seq = out2[:rows].reshape(Tp, Np, Foutp)[:T, :N, :Fout]
    # TODO(synk): train-mode dropout on hid would need pltpu.prng_seed +
    # pltpu.stateful_bernoulli; eval-mode dropout is the identity.
    hid_seq = hid_pad[:T, :N, :H]
    return out_seq, hid_seq


def decoder_cell_forward(y, prev_hidden, packed):
    """Single-step DecoderCell.forward semantics: (out (N,Fout), hid (N,H))."""
    out_seq, hid_seq = decoder_sequence_forward(y[None], prev_hidden, packed)
    return out_seq[0], hid_seq[0]


# ----------------------------------------------------------------------------
# Deterministic parameter init (shapes from nn.GRUCell / nn.Linear __init__).
# ----------------------------------------------------------------------------
def init_params(key, input_feature_len, hidden_size, output_size):
    ks = jax.random.split(key, 8)
    k = 1.0 / jnp.sqrt(hidden_size)
    k2 = 1.0 / jnp.sqrt(50.0)
    u = lambda kk, shape, lim: jax.random.uniform(
        kk, shape, jnp.float32, minval=-lim, maxval=lim)
    return {
        "w_ih": u(ks[0], (3 * hidden_size, input_feature_len), k),
        "w_hh": u(ks[1], (3 * hidden_size, hidden_size), k),
        "b_ih": u(ks[2], (3 * hidden_size,), k),
        "b_hh": u(ks[3], (3 * hidden_size,), k),
        "w_out1": u(ks[4], (50, hidden_size), k),
        "b_out1": u(ks[5], (50,), k),
        "w_out": u(ks[6], (output_size, 50), k2),
        "b_out": u(ks[7], (output_size,), k2),
    }


# Plain-JAX references for sanity checking.
def reference_step(y, h, p):
    H = h.shape[1]
    gi = y @ p["w_ih"].T + p["b_ih"]
    gh = h @ p["w_hh"].T + p["b_hh"]
    r = jax.nn.sigmoid(gi[:, :H] + gh[:, :H])
    z = jax.nn.sigmoid(gi[:, H:2 * H] + gh[:, H:2 * H])
    n = jnp.tanh(gi[:, 2 * H:] + r * gh[:, 2 * H:])
    h_new = (1.0 - z) * n + z * h
    a1 = jnp.maximum(h_new @ p["w_out1"].T + p["b_out1"], 0.0)
    out = a1 @ p["w_out"].T + p["b_out"]
    return out, h_new


def reference_sequence(y_seq, h0, p):
    outs, hids, h = [], [], h0
    for t in range(y_seq.shape[0]):
        o, h = reference_step(y_seq[t], h, p)
        outs.append(o)
        hids.append(h)
    return jnp.stack(outs), jnp.stack(hids)


if __name__ == "__main__":
    T = 8                 # decode steps
    N = 8                 # batch
    F = 16                # input_feature_len (Ft + Fnwp)
    H = 32                # hidden_size
    FOUT = 4              # output_size

    key = jax.random.PRNGKey(0)
    kp, ky, kh = jax.random.split(key, 3)
    params = init_params(kp, F, H, FOUT)
    y_seq = jax.random.normal(ky, (T, N, F), jnp.float32)
    h0 = jax.random.normal(kh, (N, H), jnp.float32)

    ref_out_seq, ref_hid_seq = reference_sequence(y_seq, h0, params)

    # --- f32 weights: strict correctness check --------------------------------
    packed_f32 = pack_params(params, F, H, FOUT, compute_dtype=jnp.float32)
    out_seq, hid_seq = decoder_sequence_forward(y_seq, h0, packed_f32)
    out_seq = jax.block_until_ready(out_seq)
    hid_seq = jax.block_until_ready(hid_seq)
    assert out_seq.shape == (T, N, FOUT) and hid_seq.shape == (T, N, H)
    assert jnp.allclose(out_seq, ref_out_seq, atol=1e-3, rtol=1e-3)
    assert jnp.allclose(hid_seq, ref_hid_seq, atol=1e-3, rtol=1e-3)

    # Single-step DecoderCell.forward semantics (module spec).
    out1, hid1 = decoder_cell_forward(y_seq[0], h0, packed_f32)
    ref_o1, ref_h1 = reference_step(y_seq[0], h0, params)
    out1 = jax.block_until_ready(out1)
    assert out1.shape == (N, FOUT) and hid1.shape == (N, H)
    assert jnp.allclose(out1, ref_o1, atol=1e-3, rtol=1e-3)
    assert jnp.allclose(hid1, ref_h1, atol=1e-3, rtol=1e-3)

    # --- bf16 weights on the MXU (elementwise stays f32): loose tolerance -----
    packed_bf16 = pack_params(params, F, H, FOUT, compute_dtype=jnp.bfloat16)
    out_bf, hid_bf = decoder_sequence_forward(y_seq, h0, packed_bf16)
    out_bf = jax.block_until_ready(out_bf)
    hid_bf = jax.block_until_ready(hid_bf)
    assert jnp.allclose(out_bf, ref_out_seq, atol=5e-2, rtol=5e-2)
    assert jnp.allclose(hid_bf, ref_hid_seq, atol=5e-2, rtol=5e-2)

    print("KERNEL_OK")
</pallas_src>

<mosaic_0001>
module attributes {stable_mosaic.version = 11 : i64} {
  func.func @input_proj_kernel(%arg0: i32, %arg1: memref<64x128xf32, #tpu.memory_space<vmem>>, %arg2: memref<128x384xf32, #tpu.memory_space<vmem>>, %arg3: memref<1x384xf32, #tpu.memory_space<vmem>>, %arg4: memref<64x384xf32, #tpu.memory_space<vmem>>) attributes {dimension_semantics = [#tpu.dimension_semantics<parallel>], iteration_bounds = array<i64: 1>, scalar_prefetch = 0 : i64, scratch_operands = 0 : i64, tpu.core_type = #tpu.core_type<tc>, window_params = [{transform_indices = @transform_0, window_bounds = array<i64: 64, 128>}, {pipeline_mode = #tpu.pipeline_mode<synchronous>, transform_indices = @transform_1, window_bounds = array<i64: 128, 384>}, {pipeline_mode = #tpu.pipeline_mode<synchronous>, transform_indices = @transform_2, window_bounds = array<i64: 1, 384>}, {transform_indices = @transform_3, window_bounds = array<i64: 64, 384>}]} {
    %c0 = arith.constant 0 : index
    %c0_0 = arith.constant 0 : index
    %0 = vector.load %arg1[%c0, %c0_0] : memref<64x128xf32, #tpu.memory_space<vmem>>, vector<64x128xf32>
    %c0_1 = arith.constant 0 : index
    %c0_2 = arith.constant 0 : index
    %1 = vector.load %arg2[%c0_1, %c0_2] : memref<128x384xf32, #tpu.memory_space<vmem>>, vector<128x384xf32>
    %cst = arith.constant dense<0.000000e+00> : vector<64x384xf32>
    %2 = tpu.matmul %0, %1, %cst {dimension_numbers = #tpu.dot_dimension_numbers<[1], [0], [0], [1], [0, 0, 1, 1], [], []>} : vector<64x128xf32>, vector<128x384xf32>, vector<64x384xf32> -> vector<64x384xf32>
    %c0_3 = arith.constant 0 : index
    %c0_4 = arith.constant 0 : index
    %3 = vector.load %arg3[%c0_3, %c0_4] : memref<1x384xf32, #tpu.memory_space<vmem>>, vector<1x384xf32>
    %4 = vector.broadcast %3 : vector<1x384xf32> to vector<64x384xf32>
    %5 = arith.addf %2, %4 : vector<64x384xf32>
    %c0_5 = arith.constant 0 : index
    %c0_6 = arith.constant 0 : index
    %6 = vector.load %arg4[%c0_5, %c0_6] : memref<64x384xf32, #tpu.memory_space<vmem>>, vector<64x384xf32>
    tpu.vector_store %arg4[%c0_5, %c0_6], %5 {strides = array<i32>} : memref<64x384xf32, #tpu.memory_space<vmem>>, vector<64x384xf32>,
    return
  }
  func.func @transform_0(%arg0: i32) -> (i32, i32) {
    %c0_i32 = arith.constant 0 : i32
    %c0_i32_0 = arith.constant 0 : i32
    return %arg0, %c0_i32 : i32, i32
  }
  func.func @transform_1(%arg0: i32) -> (i32, i32) {
    %c0_i32 = arith.constant 0 : i32
    %c0_i32_0 = arith.constant 0 : i32
    %c0_i32_1 = arith.constant 0 : i32
    return %c0_i32, %c0_i32_0 : i32, i32
  }
  func.func @transform_2(%arg0: i32) -> (i32, i32) {
    %c0_i32 = arith.constant 0 : i32
    %c0_i32_0 = arith.constant 0 : i32
    %c0_i32_1 = arith.constant 0 : i32
    return %c0_i32, %c0_i32_0 : i32, i32
  }
  func.func @transform_3(%arg0: i32) -> (i32, i32) {
    %c0_i32 = arith.constant 0 : i32
    %c0_i32_0 = arith.constant 0 : i32
    return %arg0, %c0_i32 : i32, i32
  }
}

</mosaic_0001>

<llo_original>
// kernel: tpu_custom_call.1
$region0: #{tpu_custom_call.1}
  #allocation0 [shape = 'u32[]', space=smem, size = 0x4, offset = 0x4, fixed_abs, tag = 'smem constant byte address 0x4 - core index']
  #allocation1 [shape = 'u32[144,128]{1,0:T(1,128)}', space=vmem, size = 0x12000, scoped, tag = 'internal scratch']
  %s0 = inlined_call_operand.hbm [shape: f32[64,128], index: 0, kind: input, shape index: {}]
  %s1 = inlined_call_operand.hbm [shape: f32[128,384], index: 1, kind: input, shape index: {}]
  %s2 = inlined_call_operand.vmem [shape: f32[1,384], index: 2, kind: input, shape index: {}]
  %s3 = inlined_call_operand.hbm [shape: f32[64,384], index: 3, kind: output, shape index: {}]
  %s4 = sld [smem:[#allocation0]]
  $region30: #{tpu_custom_call.1} parent=0
    _
  %s6 = ssub.s32 1, %s4
  %s7 = scalar_select 0, %s6, %s4
  $region1: #{tpu_custom_call.1} parent=0
    #allocation2 [shape = 'u8[32768]{0}', space=vmem, size = 0x8000, scoped, tag = 'input window, operand 0, single buffered']
    #allocation3 [shape = 's32[1]{0}', space=sflag, size = 0x4, scoped, tag = 'scoped memory for tpu_custom_call.1']
    #allocation4 [shape = 's32[1]{0}', space=sflag, size = 0x4, scoped, tag = 'scoped memory for tpu_custom_call.1']
    #allocation5 [shape = 'u8[196608]{0}', space=vmem, size = 0x30000, scoped, tag = 'input window, operand 1, single buffered']
    #allocation6 [shape = 's32[1]{0}', space=sflag, size = 0x4, scoped, tag = 'scoped memory for tpu_custom_call.1']
    #allocation7 [shape = 'u8[98304]{0}', space=vmem, size = 0x18000, scoped, tag = 'output window, operand 0, single buffered']
    %8 = vsyncpa [#allocation3], 0
    %9 = vsyncpa [#allocation6], 0
    %10 = vsyncpa [#allocation4], 0
    // Predicated region
    $region2: #{tpu_custom_call.1} parent=1 // pred_check
      _
    $region3: #{tpu_custom_call.1} parent=1 // pred_check_branch
      %12 = sbr.rel (0) target = $region5
    $region4: #{tpu_custom_call.1} parent=1 // pred_region
      %s14 = ssub.s32 1024, 1024
      %15 = vsyncadd [#allocation3], %s14
      %s16 = sshll.u32 [#allocation2], 4
      %s17 = int_to_ptr.vmem [resolvable:$true] %s16
      %22 = dma.hbm_to_vmem [thread:$0]  %s0, 1024, %s17, [#allocation3], 128, 128, 8
    $region5: #{tpu_custom_call.1} parent=1 // pred_fallthru
      _
    // Predicated region
    $region6: #{tpu_custom_call.1} parent=1 // pred_check
      _
    $region7: #{tpu_custom_call.1} parent=1 // pred_check_branch
      %24 = sbr.rel (0) target = $region9
    $region8: #{tpu_custom_call.1} parent=1 // pred_region
      %s26 = ssub.s32 6144, 6144
      %27 = vsyncadd [#allocation6], %s26
      %s28 = sshll.u32 [#allocation5], 4
      %s29 = int_to_ptr.vmem [resolvable:$true] %s28
      %34 = dma.hbm_to_vmem [thread:$0]  %s1, 6144, %s29, [#allocation6], 384, 384, 24
    $region9: #{tpu_custom_call.1} parent=1 // pred_fallthru
      _
    // Predicated region
    $region10: #{tpu_custom_call.1} parent=1 // pred_check
      _
    $region11: #{tpu_custom_call.1} parent=1 // pred_check_branch
      %36 = sbr.rel (0) target = $region13
    $region12: #{tpu_custom_call.1} parent=1 // pred_region
      _
    $region13: #{tpu_custom_call.1} parent=1 // pred_fallthru
      _
    // Predicated region
    $region14: #{tpu_custom_call.1} parent=1 // pred_check
      _
    $region15: #{tpu_custom_call.1} parent=1 // pred_check_branch
      %38 = sbr.rel (0) target = $region17
    $region16: #{tpu_custom_call.1} parent=1 // pred_region
      %39 = dma.done [#allocation3], 1024
    $region17: #{tpu_custom_call.1} parent=1 // pred_fallthru
      _
    // Predicated region
    $region18: #{tpu_custom_call.1} parent=1 // pred_check
      _
    $region19: #{tpu_custom_call.1} parent=1 // pred_check_branch
      %41 = sbr.rel (0) target = $region21
    $region20: #{tpu_custom_call.1} parent=1 // pred_region
      %42 = dma.done [#allocation6], 6144
    $region21: #{tpu_custom_call.1} parent=1 // pred_fallthru
      _
    %v43 = vld [vmem:[#allocation2] sm:$0xff]
    %v44 = vld [vmem:[#allocation2 + $0x8] sm:$0xff]
    %v45 = vld [vmem:[#allocation2 + $0x10] sm:$0xff]
    %v46 = vld [vmem:[#allocation2 + $0x18] sm:$0xff]
    %v47 = vld [vmem:[#allocation2 + $0x20] sm:$0xff]
    %v48 = vld [vmem:[#allocation2 + $0x28] sm:$0xff]
    %v49 = vld [vmem:[#allocation2 + $0x30] sm:$0xff]
    %v50 = vld [vmem:[#allocation2 + $0x38] sm:$0xff]
    %v51 = vld [vmem:[#allocation5] sm:$0xff]
    %v52 = vld [vmem:[#allocation5 + $0x8] sm:$0xff]
    %v53 = vld [vmem:[#allocation5 + $0x10] sm:$0xff]
    %v54 = vld [vmem:[#allocation5 + $0x18] sm:$0xff]
    %v55 = vld [vmem:[#allocation5 + $0x20] sm:$0xff]
    %v56 = vld [vmem:[#allocation5 + $0x28] sm:$0xff]
    %v57 = vld [vmem:[#allocation5 + $0x30] sm:$0xff]
    %v58 = vld [vmem:[#allocation5 + $0x38] sm:$0xff]
    %v59 = vld [vmem:[#allocation5 + $0x40] sm:$0xff]
    %v60 = vld [vmem:[#allocation5 + $0x48] sm:$0xff]
    %v61 = vld [vmem:[#allocation5 + $0x50] sm:$0xff]
    %v62 = vld [vmem:[#allocation5 + $0x58] sm:$0xff]
    %v63 = vld [vmem:[#allocation5 + $0x60] sm:$0xff]
    %v64 = vld [vmem:[#allocation5 + $0x68] sm:$0xff]
    %v65 = vld [vmem:[#allocation5 + $0x70] sm:$0xff]
    %v66 = vld [vmem:[#allocation5 + $0x78] sm:$0xff]
    %v67 = vld [vmem:[#allocation5 + $0x80] sm:$0xff]
    %v68 = vld [vmem:[#allocation5 + $0x88] sm:$0xff]
    %v69 = vld [vmem:[#allocation5 + $0x90] sm:$0xff]
    %v70 = vld [vmem:[#allocation5 + $0x98] sm:$0xff]
    %v71 = vld [vmem:[#allocation5 + $0xa0] sm:$0xff]
    %v72 = vld [vmem:[#allocation5 + $0xa8] sm:$0xff]
    %v73 = vld [vmem:[#allocation5 + $0xb0] sm:$0xff]
    %v74 = vld [vmem:[#allocation5 + $0xb8] sm:$0xff]
    %v75 = vld [vmem:[#allocation5 + $0xc0] sm:$0xff]
    %v76 = vld [vmem:[#allocation5 + $0xc8] sm:$0xff]
    %v77 = vld [vmem:[#allocation5 + $0xd0] sm:$0xff]
    %v78 = vld [vmem:[#allocation5 + $0xd8] sm:$0xff]
    %v79 = vld [vmem:[#allocation5 + $0xe0] sm:$0xff]
    %v80 = vld [vmem:[#allocation5 + $0xe8] sm:$0xff]
    %v81 = vld [vmem:[#allocation5 + $0xf0] sm:$0xff]
    %v82 = vld [vmem:[#allocation5 + $0xf8] sm:$0xff]
    %v83 = vld [vmem:[#allocation5 + $0x100] sm:$0xff]
    %v84 = vld [vmem:[#allocation5 + $0x108] sm:$0xff]
    %v85 = vld [vmem:[#allocation5 + $0x110] sm:$0xff]
    %v86 = vld [vmem:[#allocation5 + $0x118] sm:$0xff]
    %v87 = vld [vmem:[#allocation5 + $0x120] sm:$0xff]
    %v88 = vld [vmem:[#allocation5 + $0x128] sm:$0xff]
    %v89 = vld [vmem:[#allocation5 + $0x130] sm:$0xff]
    %v90 = vld [vmem:[#allocation5 + $0x138] sm:$0xff]
    %v91 = vld [vmem:[#allocation5 + $0x140] sm:$0xff]
    %v92 = vld [vmem:[#allocation5 + $0x148] sm:$0xff]
    %v93 = vld [vmem:[#allocation5 + $0x150] sm:$0xff]
    %v94 = vld [vmem:[#allocation5 + $0x158] sm:$0xff]
    %v95 = vld [vmem:[#allocation5 + $0x160] sm:$0xff]
    %v96 = vld [vmem:[#allocation5 + $0x168] sm:$0xff]
    %v97 = vld [vmem:[#allocation5 + $0x170] sm:$0xff]
    %v98 = vld [vmem:[#allocation5 + $0x178] sm:$0xff]
    %v99 = vld [vmem:[%s2] sm:$0x7]
    %v101 = vlaneseq
    %v102 = vshrl.u32 %v101, 7
    %v103 = vsub.s32 0, %v102
    %v104 = vrot.slane %v99, %v103
    %v105 = vlaneseq
    %v106 = vshrl.u32 %v105, 7
    %v107 = vsub.s32 1, %v106
    %v108 = vrot.slane %v99, %v107
    %v109 = vlaneseq
    %v110 = vshrl.u32 %v109, 7
    %v111 = vsub.s32 2, %v110
    %v112 = vrot.slane %v99, %v111
    %116 = vmatprep.subr.mxu0 %v52
    %117 = vmatpush1.msra.mxu0 %v51
    %118 = vmatprep.subr.mxu0 %v55
    %119 = vmatpush1.msra.mxu0 %v54
    %120 = vmatprep.subr.mxu0 %v58
    %121 = vmatpush1.msra.mxu0 %v57
    %122 = vmatprep.subr.mxu0 %v61
    %123 = vmatpush1.msra.mxu0 %v60
    %124 = vmatprep.subr.mxu0 %v64
    %125 = vmatpush1.msra.mxu0 %v63
    %126 = vmatprep.subr.mxu0 %v67
    %127 = vmatpush1.msra.mxu0 %v66
    %128 = vmatprep.subr.mxu0 %v70
    %129 = vmatpush1.msra.mxu0 %v69
    %130 = vmatprep.subr.mxu0 %v73
    %131 = vmatpush1.msra.mxu0 %v72
    %132 = vmatprep.subr.mxu0 %v76
    %133 = vmatpush1.msra.mxu0 %v75
    %134 = vmatprep.subr.mxu0 %v79
    %135 = vmatpush1.msra.mxu0 %v78
    %136 = vmatprep.subr.mxu0 %v82
    %137 = vmatpush1.msra.mxu0 %v81
    %138 = vmatprep.subr.mxu0 %v85
    %139 = vmatpush1.msra.mxu0 %v84
    %140 = vmatprep.subr.mxu0 %v88
    %141 = vmatpush1.msra.mxu0 %v87
    %142 = vmatprep.subr.mxu0 %v91
    %143 = vmatpush1.msra.mxu0 %v90
    %144 = vmatprep.subr.mxu0 %v94
    %145 = vmatpush1.msra.mxu0 %v93
    %146 = vmatprep.subr.mxu0 %v97
    %147 = vmatpush1.msra.mxu0 %v96
    %148 = vmatprep.subr.mxu0 0.0
    %149 = vmatpush1.msra.mxu0 0.0
    %150 = vmatprep.subr.mxu0 0.0
    %151 = vmatpush1.msra.mxu0 0.0
    %152 = vmatprep.subr.mxu0 0.0
    %153 = vmatpush1.msra.mxu0 0.0
    %154 = vmatprep.subr.mxu0 0.0
    %155 = vmatpush1.msra.mxu0 0.0
    %156 = vmatprep.subr.mxu0 0.0
    %157 = vmatpush1.msra.mxu0 0.0
    %158 = vmatprep.subr.mxu0 0.0
    %159 = vmatpush1.msra.mxu0 0.0
    %160 = vmatprep.subr.mxu0 0.0
    %161 = vmatpush1.msra.mxu0 0.0
    %162 = vmatprep.subr.mxu0 0.0
    %163 = vmatpush1.msra.mxu0 0.0
    %164 = vmatprep.subr.mxu0 0.0
    %165 = vmatpush1.msra.mxu0 0.0
    %166 = vmatprep.subr.mxu0 0.0
    %167 = vmatpush1.msra.mxu0 0.0
    %168 = vmatprep.subr.mxu0 0.0
    %169 = vmatpush1.msra.mxu0 0.0
    %170 = vmatprep.subr.mxu0 0.0
    %171 = vmatpush1.msra.mxu0 0.0
    %172 = vmatprep.subr.mxu0 0.0
    %173 = vmatpush1.msra.mxu0 0.0
    %174 = vmatprep.subr.mxu0 0.0
    %175 = vmatpush1.msra.mxu0 0.0
    %176 = vmatprep.subr.mxu0 0.0
    %177 = vmatpush1.msra.mxu0 0.0
    %178 = vmatprep.subr.mxu0 0.0
    %179 = vmatpush1.msra.mxu0 0.0
    %180 = vmatprep.mubr.f32.mxu0 0.0
    %181 = vmatmul.mubr.f32.gmra.mrb[0].mxu0 %v43
    %v182 = vpop.f32.mrb[0].mxu0
    %v183 = vadd.f32 %v104, %v182
    %v184 = vpop.f32.mrb[0].mxu0
    %v185 = vadd.f32 %v108, %v184
    %186 = vmatprep.mubr.f32.mxu0 0.0
    %187 = vmatmul.mubr.f32.gmra.mrb[0].mxu0 %v44
    %v188 = vpop.f32.mrb[0].mxu0
    %v189 = vadd.f32 %v104, %v188
    %v190 = vpop.f32.mrb[0].mxu0
    %v191 = vadd.f32 %v108, %v190
    %192 = vmatprep.mubr.f32.mxu0 0.0
    %193 = vmatmul.mubr.f32.gmra.mrb[0].mxu0 %v45
    %v194 = vpop.f32.mrb[0].mxu0
    %v195 = vadd.f32 %v104, %v194
    %v196 = vpop.f32.mrb[0].mxu0
    %v197 = vadd.f32 %v108, %v196
    %198 = vmatprep.mubr.f32.mxu0 0.0
    %199 = vmatmul.mubr.f32.gmra.mrb[0].mxu0 %v46
    %v200 = vpop.f32.mrb[0].mxu0
    %v201 = vadd.f32 %v104, %v200
    %v202 = vpop.f32.mrb[0].mxu0
    %v203 = vadd.f32 %v108, %v202
    %204 = vmatprep.mubr.f32.mxu0 0.0
    %205 = vmatmul.mubr.f32.gmra.mrb[0].mxu0 %v47
    %v206 = vpop.f32.mrb[0].mxu0
    %v207 = vadd.f32 %v104, %v206
    %v208 = vpop.f32.mrb[0].mxu0
    %v209 = vadd.f32 %v108, %v208
    %210 = vmatprep.mubr.f32.mxu0 0.0
    %211 = vmatmul.mubr.f32.gmra.mrb[0].mxu0 %v48
    %v212 = vpop.f32.mrb[0].mxu0
    %v213 = vadd.f32 %v104, %v212
    %v214 = vpop.f32.mrb[0].mxu0
    %v215 = vadd.f32 %v108, %v214
    %216 = vmatprep.mubr.f32.mxu0 0.0
    %217 = vmatmul.mubr.f32.gmra.mrb[0].mxu0 %v49
    %v218 = vpop.f32.mrb[0].mxu0
    %v219 = vadd.f32 %v104, %v218
    %v220 = vpop.f32.mrb[0].mxu0
    %v221 = vadd.f32 %v108, %v220
    %222 = vmatprep.mubr.f32.mxu0 0.0
    %223 = vmatmul.mubr.f32.gmra.mrb[0].mxu0 %v50
    %v224 = vpop.f32.mrb[0].mxu0
    %v225 = vadd.f32 %v104, %v224
    %v226 = vpop.f32.mrb[0].mxu0
    %v227 = vadd.f32 %v108, %v226
    %228 = vdwg.mxu0
    %229 = vmatprep.subr.mxu0 0.0
    %230 = vmatpush1.msra.mxu0 %v53
    %231 = vmatprep.subr.mxu0 0.0
    %232 = vmatpush1.msra.mxu0 %v56
    %233 = vmatprep.subr.mxu0 0.0
    %234 = vmatpush1.msra.mxu0 %v59
    %235 = vmatprep.subr.mxu0 0.0
    %236 = vmatpush1.msra.mxu0 %v62
    %237 = vmatprep.subr.mxu0 0.0
    %238 = vmatpush1.msra.mxu0 %v65
    %239 = vmatprep.subr.mxu0 0.0
    %240 = vmatpush1.msra.mxu0 %v68
    %241 = vmatprep.subr.mxu0 0.0
    %242 = vmatpush1.msra.mxu0 %v71
    %243 = vmatprep.subr.mxu0 0.0
    %244 = vmatpush1.msra.mxu0 %v74
    %245 = vmatprep.subr.mxu0 0.0
    %246 = vmatpush1.msra.mxu0 %v77
    %247 = vmatprep.subr.mxu0 0.0
    %248 = vmatpush1.msra.mxu0 %v80
    %249 = vmatprep.subr.mxu0 0.0
    %250 = vmatpush1.msra.mxu0 %v83
    %251 = vmatprep.subr.mxu0 0.0
    %252 = vmatpush1.msra.mxu0 %v86
    %253 = vmatprep.subr.mxu0 0.0
    %254 = vmatpush1.msra.mxu0 %v89
    %255 = vmatprep.subr.mxu0 0.0
    %256 = vmatpush1.msra.mxu0 %v92
    %257 = vmatprep.subr.mxu0 0.0
    %258 = vmatpush1.msra.mxu0 %v95
    %259 = vmatprep.subr.mxu0 0.0
    %260 = vmatpush1.msra.mxu0 %v98
    %261 = vmatprep.subr.mxu0 0.0
    %262 = vmatpush1.msra.mxu0 0.0
    %263 = vmatprep.subr.mxu0 0.0
    %264 = vmatpush1.msra.mxu0 0.0
    %265 = vmatprep.subr.mxu0 0.0
    %266 = vmatpush1.msra.mxu0 0.0
    %267 = vmatprep.subr.mxu0 0.0
    %268 = vmatpush1.msra.mxu0 0.0
    %269 = vmatprep.subr.mxu0 0.0
    %270 = vmatpush1.msra.mxu0 0.0
    %271 = vmatprep.subr.mxu0 0.0
    %272 = vmatpush1.msra.mxu0 0.0
    %273 = vmatprep.subr.mxu0 0.0
    %274 = vmatpush1.msra.mxu0 0.0
    %275 = vmatprep.subr.mxu0 0.0
    %276 = vmatpush1.msra.mxu0 0.0
    %277 = vmatprep.subr.mxu0 0.0
    %278 = vmatpush1.msra.mxu0 0.0
    %279 = vmatprep.subr.mxu0 0.0
    %280 = vmatpush1.msra.mxu0 0.0
    %281 = vmatprep.subr.mxu0 0.0
    %282 = vmatpush1.msra.mxu0 0.0
    %283 = vmatprep.subr.mxu0 0.0
    %284 = vmatpush1.msra.mxu0 0.0
    %285 = vmatprep.subr.mxu0 0.0
    %286 = vmatpush1.msra.mxu0 0.0
    %287 = vmatprep.subr.mxu0 0.0
    %288 = vmatpush1.msra.mxu0 0.0
    %289 = vmatprep.subr.mxu0 0.0
    %290 = vmatpush1.msra.mxu0 0.0
    %291 = vmatprep.subr.mxu0 0.0
    %292 = vmatpush1.msra.mxu0 0.0
    %293 = vmatprep.mubr.f32.mxu0 0.0
    %294 = vmatmul.mubr.f32.gmra.mrb[0].mxu0 %v43
    %v295 = vpop.f32.mrb[0].mxu0
    %v296 = vadd.f32 %v112, %v295
    %v297 = vpop.f32.mrb[0].mxu0
    %298 = vmatprep.mubr.f32.mxu0 0.0
    %299 = vmatmul.mubr.f32.gmra.mrb[0].mxu0 %v44
    %v300 = vpop.f32.mrb[0].mxu0
    %v301 = vadd.f32 %v112, %v300
    %v302 = vpop.f32.mrb[0].mxu0
    %303 = vmatprep.mubr.f32.mxu0 0.0
    %304 = vmatmul.mubr.f32.gmra.mrb[0].mxu0 %v45
    %v305 = vpop.f32.mrb[0].mxu0
    %v306 = vadd.f32 %v112, %v305
    %v307 = vpop.f32.mrb[0].mxu0
    %308 = vmatprep.mubr.f32.mxu0 0.0
    %309 = vmatmul.mubr.f32.gmra.mrb[0].mxu0 %v46
    %v310 = vpop.f32.mrb[0].mxu0
    %v311 = vadd.f32 %v112, %v310
    %v312 = vpop.f32.mrb[0].mxu0
    %313 = vmatprep.mubr.f32.mxu0 0.0
    %314 = vmatmul.mubr.f32.gmra.mrb[0].mxu0 %v47
    %v315 = vpop.f32.mrb[0].mxu0
    %v316 = vadd.f32 %v112, %v315
    %v317 = vpop.f32.mrb[0].mxu0
    %318 = vmatprep.mubr.f32.mxu0 0.0
    %319 = vmatmul.mubr.f32.gmra.mrb[0].mxu0 %v48
    %v320 = vpop.f32.mrb[0].mxu0
    %v321 = vadd.f32 %v112, %v320
    %v322 = vpop.f32.mrb[0].mxu0
    %323 = vmatprep.mubr.f32.mxu0 0.0
    %324 = vmatmul.mubr.f32.gmra.mrb[0].mxu0 %v49
    %v325 = vpop.f32.mrb[0].mxu0
    %v326 = vadd.f32 %v112, %v325
    %v327 = vpop.f32.mrb[0].mxu0
    %328 = vmatprep.mubr.f32.mxu0 0.0
    %329 = vmatmul.mubr.f32.gmra.mrb[0].mxu0 %v50
    %v330 = vpop.f32.mrb[0].mxu0
    %v331 = vadd.f32 %v112, %v330
    %v332 = vpop.f32.mrb[0].mxu0
    %333 = vdwg.mxu0
    %334 = vst [vmem:[#allocation7] sm:$0xff] %v183
    %335 = vst [vmem:[#allocation7 + $0x8] sm:$0xff] %v185
    %336 = vst [vmem:[#allocation7 + $0x10] sm:$0xff] %v296
    %337 = vst [vmem:[#allocation7 + $0x18] sm:$0xff] %v189
    %338 = vst [vmem:[#allocation7 + $0x20] sm:$0xff] %v191
    %339 = vst [vmem:[#allocation7 + $0x28] sm:$0xff] %v301
    %340 = vst [vmem:[#allocation7 + $0x30] sm:$0xff] %v195
    %341 = vst [vmem:[#allocation7 + $0x38] sm:$0xff] %v197
    %342 = vst [vmem:[#allocation7 + $0x40] sm:$0xff] %v306
    %343 = vst [vmem:[#allocation7 + $0x48] sm:$0xff] %v201
    %344 = vst [vmem:[#allocation7 + $0x50] sm:$0xff] %v203
    %345 = vst [vmem:[#allocation7 + $0x58] sm:$0xff] %v311
    %346 = vst [vmem:[#allocation7 + $0x60] sm:$0xff] %v207
    %347 = vst [vmem:[#allocation7 + $0x68] sm:$0xff] %v209
    %348 = vst [vmem:[#allocation7 + $0x70] sm:$0xff] %v316
    %349 = vst [vmem:[#allocation7 + $0x78] sm:$0xff] %v213
    %350 = vst [vmem:[#allocation7 + $0x80] sm:$0xff] %v215
    %351 = vst [vmem:[#allocation7 + $0x88] sm:$0xff] %v321
    %352 = vst [vmem:[#allocation7 + $0x90] sm:$0xff] %v219
    %353 = vst [vmem:[#allocation7 + $0x98] sm:$0xff] %v221
    %354 = vst [vmem:[#allocation7 + $0xa0] sm:$0xff] %v326
    %355 = vst [vmem:[#allocation7 + $0xa8] sm:$0xff] %v225
    %356 = vst [vmem:[#allocation7 + $0xb0] sm:$0xff] %v227
    %357 = vst [vmem:[#allocation7 + $0xb8] sm:$0xff] %v331
    // Predicated region
    $region22: #{tpu_custom_call.1} parent=1 // pred_check
      _
    $region23: #{tpu_custom_call.1} parent=1 // pred_check_branch
      %359 = sbr.rel (0) target = $region25
    $region24: #{tpu_custom_call.1} parent=1 // pred_region
      %s361 = ssub.s32 3072, 3072
      %362 = vsyncadd [#allocation4], %s361
      %s363 = sshll.u32 [#allocation7], 4
      %s364 = int_to_ptr.vmem [resolvable:$true] %s363
      %369 = dma.vmem_to_hbm [thread:$0]  %s364, 3072, %s3, [#allocation4], 384, 384, 24
    $region25: #{tpu_custom_call.1} parent=1 // pred_fallthru
      _
    // Predicated region
    $region26: #{tpu_custom_call.1} parent=1 // pred_check
      _
    $region27: #{tpu_custom_call.1} parent=1 // pred_check_branch
      %371 = sbr.rel (0) target = $region29
    $region28: #{tpu_custom_call.1} parent=1 // pred_region
      %372 = dma.done [#allocation4], 3072
    $region29: #{tpu_custom_call.1} parent=1 // pred_fallthru
      _
    %373 = vsyncpa [#allocation3], 1
    %374 = vsyncpa [#allocation6], 1
    %375 = vsyncpa [#allocation4], 1

</llo_original>
